<compile_context>
chip_gen: v7x
topology: tpu7x:2x2x1
jax: 0.10.0
libtpu: 0.0.40
codegen_flags: <defaults>
</compile_context>

<pallas_src>
import functools

import jax
import jax.numpy as jnp
from jax import lax
from jax.experimental import pallas as pl
from jax.experimental.pallas import tpu as pltpu


def _embed_kernel(x_ref, w_ref, pb_ref, o_ref):
    # x_ref:  (TN, K_pad) bf16 patch tile of one image
    # w_ref:  (K_pad, D)  bf16 flattened conv weight (grid-invariant, resident)
    # pb_ref: (TN, D)     bf16 position embedding + conv bias tile
    # o_ref:  (TN, D)     output tile (bf16 by default)
    y = jnp.dot(x_ref[...], w_ref[...], preferred_element_type=jnp.float32)
    o_ref[...] = (y + pb_ref[...].astype(jnp.float32)).astype(o_ref.dtype)


def _round_up(x, m):
    return ((x + m - 1) // m) * m


def _pick_n_tile(n, max_tile=256, min_tiles=4):
    """Patch-dim tile: multiple of 16 (bf16 sublane packing), <= max_tile, and
    at least `min_tiles` grid steps so pipelining / megacore sharding have
    work to overlap.  Real SigLIP N (196, 729) have no nice divisors, so the
    grid uses cdiv and the masked edge tile is handled by Pallas on store."""
    if n <= 32:
        return n                       # tiny: full-extent block is always legal
    if n >= min_tiles * max_tile:
        return max_tile
    return min(max_tile, max(16, _round_up(-(-n // min_tiles), 16)))


def prepare_siglip_embedding_params(conv_weight, conv_bias, pos_embedding,
                                    compute_dtype=jnp.bfloat16,
                                    k_pad_multiple=128):
    """One-time weight prep (hoisted out of the per-call hot path).

    k_pad_multiple: zero-pad the contraction dim K = C*P*P to this multiple
    for lane-dense, unmasked MXU passes.  128 is right for v5e; pass 256 on
    v6e/v7x (2x256^2 MXUs) at the cost of a few extra zero patch bytes.
    """
    D, C, P, _ = conv_weight.shape
    K = C * P * P
    K_pad = _round_up(K, k_pad_multiple)
    w_flat = jnp.asarray(conv_weight).reshape(D, K).T          # (K, D), (c,kh,kw)
    if K_pad != K:
        w_flat = jnp.pad(w_flat, ((0, K_pad - K), (0, 0)))
    w_flat = w_flat.astype(compute_dtype)
    # Fold the conv bias into the position embedding.  Stored in bf16: it is
    # a large HBM stream re-read once per patch tile; the in-kernel f32 upcast
    # before the add keeps the accumulate path in f32.
    pos_plus_bias = (jnp.asarray(pos_embedding, jnp.float32)
                     + jnp.asarray(conv_bias, jnp.float32)[None, :])   # (N, D)
    return w_flat, pos_plus_bias.astype(compute_dtype)


@functools.partial(jax.jit,
                   static_argnames=("patch_size", "compute_dtype", "out_dtype"))
def siglip_vision_embeddings(pixel_values, w_flat, pos_plus_bias, *,
                             patch_size, compute_dtype=jnp.bfloat16,
                             out_dtype=jnp.bfloat16):
    """pixel_values: (B, C, H, W) float32 (NCHW, like the PyTorch module)."""
    B, C, H, W = pixel_values.shape
    P = patch_size
    Hp, Wp = H // P, W // P
    N = Hp * Wp
    K = C * P * P
    K_pad, D = w_flat.shape
    assert K_pad >= K and pos_plus_bias.shape == (N, D)

    # Patch extraction in (c, kh, kw) order -> matches the flattened weight.
    # Cast to bf16 and zero-pad K in the same fused XLA pass so the extra HBM
    # write is half-width.
    # TODO(synk): fuse this into the kernel (BlockSpec pixel_values as
    # (1, C, P, W) patch-row slabs, reorder to (Wp, K) in VMEM) to remove the
    # extra HBM round trip (~25-30% of end-to-end traffic at B=1).
    patches = pixel_values.reshape(B, C, Hp, P, Wp, P)
    patches = jnp.transpose(patches, (0, 2, 4, 1, 3, 5)).reshape(B, N, K)
    patches = patches.astype(compute_dtype)
    if K_pad != K:
        patches = jnp.pad(patches, ((0, 0), (0, 0), (0, K_pad - K)))

    TN = _pick_n_tile(N)
    n_tiles = pl.cdiv(N, TN)
    grid = (n_tiles, B)        # batch innermost: weight / pos tiles stay resident

    grid_spec = pltpu.PrefetchScalarGridSpec(
        num_scalar_prefetch=0,
        grid=grid,
        in_specs=[
            # Squeezed batch dim: kernel sees (TN, K_pad) directly.
            pl.BlockSpec((None, TN, K_pad), lambda n, b: (b, n, 0)),   # patches
            # Grid-invariant weight; fetched once, block index never changes.
            # (pl.Buffered(1) pipeline_mode would reclaim its second VMEM
            # buffer; left at the default for portability.)
            pl.BlockSpec((K_pad, D), lambda n, b: (0, 0)),             # weight
            pl.BlockSpec((TN, D), lambda n, b: (n, 0)),                # pos+bias
        ],
        out_specs=pl.BlockSpec((None, TN, D), lambda n, b: (b, n, 0)),
    )

    itemsize = jnp.dtype(compute_dtype).itemsize
    cost = pl.CostEstimate(
        flops=2 * B * N * K_pad * D,
        transcendentals=0,
        bytes_accessed=(B * N * K_pad * itemsize                 # patches
                        + K_pad * D * itemsize                   # weight
                        + N * D * itemsize                       # pos + bias
                        + B * N * D * jnp.dtype(out_dtype).itemsize),
    )

    return pl.pallas_call(
        _embed_kernel,
        out_shape=jax.ShapeDtypeStruct((B, N, D), out_dtype),
        grid_spec=grid_spec,
        compiler_params=pltpu.CompilerParams(
            dimension_semantics=("parallel", "parallel"),
            vmem_limit_bytes=32 * 1024 * 1024),
        cost_estimate=cost,
    )(patches, w_flat, pos_plus_bias)


def _reference(pixel_values, conv_weight, conv_bias, pos_embedding, patch_size):
    # Independent reference using XLA's conv (NCHW / OIHW, stride = patch).
    out = lax.conv_general_dilated(
        pixel_values, conv_weight,
        window_strides=(patch_size, patch_size),
        padding="VALID",
        dimension_numbers=("NCHW", "OIHW", "NCHW"),
    )                                                              # (B, D, Hp, Wp)
    out = out + conv_bias[None, :, None, None]
    B, D = out.shape[0], out.shape[1]
    out = out.reshape(B, D, -1).transpose(0, 2, 1)                 # (B, N, D)
    return out + pos_embedding[None]


def _run_case(seed, B, C, IMG, P, D):
    N = (IMG // P) ** 2
    key = jax.random.PRNGKey(seed)
    k_px, k_w, k_b, k_pos = jax.random.split(key, 4)

    pixel_values = jax.random.normal(k_px, (B, C, IMG, IMG), dtype=jnp.float32)
    conv_weight = jax.random.normal(k_w, (D, C, P, P), dtype=jnp.float32) * 0.02
    conv_bias = jax.random.normal(k_b, (D,), dtype=jnp.float32) * 0.02
    pos_embedding = jax.random.normal(k_pos, (N, D), dtype=jnp.float32) * 0.02

    # One-time prep (weight flatten/transpose + K zero-pad + bias folded in).
    w_flat, pos_plus_bias = prepare_siglip_embedding_params(
        conv_weight, conv_bias, pos_embedding)

    out = siglip_vision_embeddings(pixel_values, w_flat, pos_plus_bias,
                                   patch_size=P)
    out = jax.block_until_ready(out)

    ref = _reference(pixel_values, conv_weight, conv_bias, pos_embedding, P)
    assert out.shape == (B, N, D), out.shape
    # bf16 matmul inputs / bf16 output vs f32 conv reference.
    assert jnp.allclose(out.astype(jnp.float32), ref, atol=2e-2, rtol=2e-2), \
        f"mismatch vs reference (B={B}, IMG={IMG}, P={P}, D={D})"


if __name__ == "__main__":
    # Small SiglipVisionConfig-consistent shapes (num_channels=3, hidden=32).
    _run_case(0, B=2, C=3, IMG=16, P=4, D=32)   # N = 16: single full tile
    _run_case(0, B=2, C=3, IMG=24, P=4, D=32)   # N = 36: cdiv grid, masked
                                                #   edge tile exercised
    print("KERNEL_OK")
</pallas_src>

<mosaic_0001>
module attributes {stable_mosaic.version = 11 : i64} {
  func.func @_embed_kernel(%arg0: i32, %arg1: i32, %arg2: memref<1x16x128xbf16, #tpu.memory_space<vmem>>, %arg3: memref<128x32xbf16, #tpu.memory_space<vmem>>, %arg4: memref<16x32xbf16, #tpu.memory_space<vmem>>, %arg5: memref<1x16x32xbf16, #tpu.memory_space<vmem>>) attributes {dimension_semantics = [#tpu.dimension_semantics<parallel>, #tpu.dimension_semantics<parallel>], iteration_bounds = array<i64: 1, 2>, scalar_prefetch = 0 : i64, scratch_operands = 0 : i64, tpu.core_type = #tpu.core_type<tc>, window_params = [{transform_indices = @transform_0, window_bounds = array<i64: 1, 16, 128>}, {pipeline_mode = #tpu.pipeline_mode<synchronous>, transform_indices = @transform_1, window_bounds = array<i64: 128, 32>}, {transform_indices = @transform_2, window_bounds = array<i64: 16, 32>}, {transform_indices = @transform_3, window_bounds = array<i64: 1, 16, 32>}]} {
    %c0 = arith.constant 0 : index
    %c0_0 = arith.constant 0 : index
    %c0_1 = arith.constant 0 : index
    %0 = vector.load %arg2[%c0, %c0_0, %c0_1] : memref<1x16x128xbf16, #tpu.memory_space<vmem>>, vector<1x16x128xbf16>
    %1 = vector.shape_cast %0 : vector<1x16x128xbf16> to vector<16x128xbf16>
    %c0_2 = arith.constant 0 : index
    %c0_3 = arith.constant 0 : index
    %2 = vector.load %arg3[%c0_2, %c0_3] : memref<128x32xbf16, #tpu.memory_space<vmem>>, vector<128x32xbf16>
    %cst = arith.constant dense<0.000000e+00> : vector<16x32xf32>
    %3 = tpu.matmul %1, %2, %cst {dimension_numbers = #tpu.dot_dimension_numbers<[1], [0], [0], [1], [0, 0, 1, 1], [], []>} : vector<16x128xbf16>, vector<128x32xbf16>, vector<16x32xf32> -> vector<16x32xf32>
    %c0_4 = arith.constant 0 : index
    %c0_5 = arith.constant 0 : index
    %4 = vector.load %arg4[%c0_4, %c0_5] : memref<16x32xbf16, #tpu.memory_space<vmem>>, vector<16x32xbf16>
    %5 = arith.extf %4 : vector<16x32xbf16> to vector<16x32xf32>
    %6 = arith.addf %3, %5 : vector<16x32xf32>
    %7 = arith.truncf %6 : vector<16x32xf32> to vector<16x32xbf16>
    %c0_6 = arith.constant 0 : index
    %c0_7 = arith.constant 0 : index
    %c0_8 = arith.constant 0 : index
    %8 = vector.load %arg5[%c0_6, %c0_7, %c0_8] : memref<1x16x32xbf16, #tpu.memory_space<vmem>>, vector<1x16x32xbf16>
    %9 = vector.shape_cast %8 : vector<1x16x32xbf16> to vector<16x32xbf16>
    %10 = vector.shape_cast %7 : vector<16x32xbf16> to vector<1x16x32xbf16>
    tpu.vector_store %arg5[%c0_6, %c0_7, %c0_8], %10 {strides = array<i32>} : memref<1x16x32xbf16, #tpu.memory_space<vmem>>, vector<1x16x32xbf16>,
    return
  }
  func.func @transform_0(%arg0: i32, %arg1: i32) -> (i32, i32, i32) {
    %c0_i32 = arith.constant 0 : i32
    %c0_i32_0 = arith.constant 0 : i32
    return %arg1, %arg0, %c0_i32 : i32, i32, i32
  }
  func.func @transform_1(%arg0: i32, %arg1: i32) -> (i32, i32) {
    %c0_i32 = arith.constant 0 : i32
    %c0_i32_0 = arith.constant 0 : i32
    %c0_i32_1 = arith.constant 0 : i32
    return %c0_i32, %c0_i32_0 : i32, i32
  }
  func.func @transform_2(%arg0: i32, %arg1: i32) -> (i32, i32) {
    %c0_i32 = arith.constant 0 : i32
    %c0_i32_0 = arith.constant 0 : i32
    return %arg0, %c0_i32 : i32, i32
  }
  func.func @transform_3(%arg0: i32, %arg1: i32) -> (i32, i32, i32) {
    %c0_i32 = arith.constant 0 : i32
    %c0_i32_0 = arith.constant 0 : i32
    return %arg1, %arg0, %c0_i32 : i32, i32, i32
  }
}

</mosaic_0001>

<llo_original>
// kernel: siglip_vision_embeddings.1
$region0: #{siglip_vision_embeddings.1}
  #allocation0 [shape = 'u32[]', space=smem, size = 0x4, offset = 0x4, fixed_abs, tag = 'smem constant byte address 0x4 - core index']
  #allocation1 [shape = 'u32[144,128]{1,0:T(1,128)}', space=vmem, size = 0x12000, scoped, tag = 'internal scratch']
  %s0 = inlined_call_operand.vmem [shape: bf16[2,16,128], index: 0, kind: input, shape index: {}]
  %s1 = inlined_call_operand.vmem [shape: bf16[128,32], index: 1, kind: input, shape index: {}]
  %s2 = inlined_call_operand.vmem [shape: bf16[16,32], index: 2, kind: input, shape index: {}]
  %s3 = inlined_call_operand.hbm [shape: bf16[2,16,32], index: 3, kind: output, shape index: {}]
  %s4 = sld [smem:[#allocation0]]
  $region45: #{siglip_vision_embeddings.1} parent=0
    _
  %s6 = ssub.s32 1, %s4
  %s7 = scalar_select 0, %s6, %s4
  $region1: #{siglip_vision_embeddings.1} parent=0
    #allocation2 [shape = 'u8[8192]{0}', space=vmem, size = 0x2000, scoped, tag = 'output window, operand 0']
    #allocation3 [shape = 's32[2]{0}', space=sflag, size = 0x8, scoped, tag = 'scoped memory for siglip_vision_embeddings.1']
    %8 = vsyncpa [#allocation3], 0
    %s9 = scalar_lea.sflag [#allocation3], 1
    %10 = vsyncpa %s9, 0
    loop: start=0, step=1, limit=4
    $region2: #{siglip_vision_embeddings.1} parent=1 // loop_pre_header
      _
    $region3: #{siglip_vision_embeddings.1} parent=1 // loop_header
      %s12 = sphi 0, %s16
      %p13 = scmp.ge.s32.totalorder %s12, 4
      %s19 = sphi 0, %s31
      %s20 = sphi 0, %s27
      %s21 = sphi 0, %s19
      %s22 = sphi 0, %s20
      %s23 = sphi 0, %s21
      %s24 = sphi 0, %s22
      %s36 = sphi 0, %s38
      %s39 = sphi 0, %s36
      %s40 = sphi 0, %s39
      %s56 = sphi 0, %s40
      %s60 = sphi 0, %s60
      %s62 = sphi 0, %s60
      %s63 = sphi 0, %s62
      %s77 = sphi 0, %s63
      %s83 = sphi 0, %s85
      %s86 = sphi 0, %s83
      %s87 = sphi 0, %s86
      %s103 = sphi 0, %s87
      %s111 = sphi 0, %s113
      %s114 = sphi 0, %s111
      %s115 = sphi 0, %s114
      %s131 = sphi 0, %s115
    $region4: #{siglip_vision_embeddings.1} parent=1 // loop_header_branch
      %15 = sbr.rel (%p13) target = $region8
    $region5: #{siglip_vision_embeddings.1} parent=1 // loop_body
      %s17 = ssub.s32 %s12, 1
      %s18 = ssub.s32 %s12, 2
      %s25 = sadd.s32 1, %s20
      %p26 = scmp.ge.s32.totalorder %s25, 2
      %s27 = scalar_select %p26, 0, %s25
      %s28 = sadd.s32 1, %s19
      %s29 = scalar_select %p26, %s28, %s19
      %p30 = scmp.ge.s32.totalorder %s29, 1
      %s31 = scalar_select %p30, 0, %s29
      %s32 = ssub.s32 %s20, %s27
      %s33 = ssub.s32 %s19, %s31
      %s34 = sor.u32 %s32, %s33
      %p35 = scmp.eq.s32.totalorder %s34, 0
      %s37 = sadd.s32 %s36, 1
      %s38 = scalar_select %p35, %s36, %s37
      %p41 = pneg %p35
      %p42 = scmp.eq.s32.totalorder %s12, 1
      %p43 = por %p41, %p42
      %p44 = scmp.ne.s32.totalorder %s36, %s39
      %p45 = scmp.eq.s32.totalorder %s12, 0
      %p46 = por %p44, %p45
      %p47 = scmp.ne.s32.totalorder %s36, %s39
      %p48 = scmp.eq.s32.totalorder %s17, 1
      %p49 = por %p47, %p48
      %p50 = scmp.ne.s32.totalorder %s39, %s40
      %p51 = scmp.eq.s32.totalorder %s17, 0
      %p52 = por %p50, %p51
      %p53 = scmp.ne.s32.totalorder %s39, %s40
      %p54 = scmp.eq.s32.totalorder %s18, 1
      %p55 = por %p53, %p54
      %p57 = scmp.ne.s32.totalorder %s40, %s56
      %p58 = scmp.eq.s32.totalorder %s18, 0
      %p59 = por %p57, %p58
      %s61 = sadd.s32 %s60, 1
      %p64 = scmp.eq.s32.totalorder %s12, 1
      %p65 = scmp.ne.s32.totalorder %s60, %s62
      %p66 = scmp.eq.s32.totalorder %s12, 0
      %p67 = por %p65, %p66
      %p68 = scmp.ne.s32.totalorder %s60, %s62
      %p69 = scmp.eq.s32.totalorder %s17, 1
      %p70 = por %p68, %p69
      %p71 = scmp.ne.s32.totalorder %s62, %s63
      %p72 = scmp.eq.s32.totalorder %s17, 0
      %p73 = por %p71, %p72
      %p74 = scmp.ne.s32.totalorder %s62, %s63
      %p75 = scmp.eq.s32.totalorder %s18, 1
      %p76 = por %p74, %p75
      %p78 = scmp.ne.s32.totalorder %s63, %s77
      %p79 = scmp.eq.s32.totalorder %s18, 0
      %p80 = por %p78, %p79
      %s81 = ssub.s32 %s19, %s31
      %p82 = scmp.eq.s32.totalorder %s81, 0
      %s84 = sadd.s32 %s83, 1
      %s85 = scalar_select %p82, %s83, %s84
      %p88 = pneg %p82
      %p89 = scmp.eq.s32.totalorder %s12, 1
      %p90 = por %p88, %p89
      %p91 = scmp.ne.s32.totalorder %s83, %s86
      %p92 = scmp.eq.s32.totalorder %s12, 0
      %p93 = por %p91, %p92
      %p94 = scmp.ne.s32.totalorder %s83, %s86
      %p95 = scmp.eq.s32.totalorder %s17, 1
      %p96 = por %p94, %p95
      %p97 = scmp.ne.s32.totalorder %s86, %s87
      %p98 = scmp.eq.s32.totalorder %s17, 0
      %p99 = por %p97, %p98
      %p100 = scmp.ne.s32.totalorder %s86, %s87
      %p101 = scmp.eq.s32.totalorder %s18, 1
      %p102 = por %p100, %p101
      %p104 = scmp.ne.s32.totalorder %s87, %s103
      %p105 = scmp.eq.s32.totalorder %s18, 0
      %p106 = por %p104, %p105
      %s107 = ssub.s32 %s20, %s27
      %s108 = ssub.s32 %s19, %s31
      %s109 = sor.u32 %s107, %s108
      %p110 = scmp.eq.s32.totalorder %s109, 0
      %s112 = sadd.s32 %s111, 1
      %s113 = scalar_select %p110, %s111, %s112
      %p116 = pneg %p110
      %p117 = scmp.eq.s32.totalorder %s12, 1
      %p118 = por %p116, %p117
      %p119 = scmp.ne.s32.totalorder %s111, %s114
      %p120 = scmp.eq.s32.totalorder %s12, 0
      %p121 = por %p119, %p120
      %p122 = scmp.ne.s32.totalorder %s111, %s114
      %p123 = scmp.eq.s32.totalorder %s17, 1
      %p124 = por %p122, %p123
      %p125 = scmp.ne.s32.totalorder %s114, %s115
      %p126 = scmp.eq.s32.totalorder %s17, 0
      %p127 = por %p125, %p126
      %p128 = scmp.ne.s32.totalorder %s114, %s115
      %p129 = scmp.eq.s32.totalorder %s18, 1
      %p130 = por %p128, %p129
      %p132 = scmp.ne.s32.totalorder %s115, %s131
      %p133 = scmp.eq.s32.totalorder %s18, 0
      %p134 = por %p132, %p133
      %p135 = scmp.le.s32.totalorder 1, %s12
      %p136 = scmp.lt.s32.totalorder %s12, 3
      %p137 = pnand %p135, %p136
      %p138 = pneg %p137
      // Predicated region
      $region9: #{siglip_vision_embeddings.1} parent=5 // pred_check
        _
      $region10: #{siglip_vision_embeddings.1} parent=5 // pred_check_branch
        %140 = sbr.rel (%p137) target = $region12
      $region11: #{siglip_vision_embeddings.1} parent=5 // pred_region
        %s141 = ssub.s32 %s12, 1
        // Predicated region
        $region13: #{siglip_vision_embeddings.1} parent=11 // pred_check
          %p142 = pneg %p73
        $region14: #{siglip_vision_embeddings.1} parent=11 // pred_check_branch
          %144 = sbr.rel (%p142) target = $region16
        $region15: #{siglip_vision_embeddings.1} parent=11 // pred_region
          _
        $region16: #{siglip_vision_embeddings.1} parent=11 // pred_fallthru
          _
        // Predicated region
        $region17: #{siglip_vision_embeddings.1} parent=11 // pred_check
          %p145 = pneg %p99
        $region18: #{siglip_vision_embeddings.1} parent=11 // pred_check_branch
          %147 = sbr.rel (%p145) target = $region20
        $region19: #{siglip_vision_embeddings.1} parent=11 // pred_region
          %s148 = smul.u32 2, %s21
          %p149 = scmp.lt.s32.totalorder %s148, 1
          %s150 = scalar_select %p149, %s148, 1
          %s151 = smul.addr %s150, 4
          %s152 = scalar_lea.vmem %s2, %s151
          %s153 = smul.u32 2, %s21
        $region20: #{siglip_vision_embeddings.1} parent=11 // pred_fallthru
          _
      $region12: #{siglip_vision_embeddings.1} parent=5 // pred_fallthru
        _
      %p154 = scmp.lt.s32.totalorder %s12, 2
      // Predicated region
      $region21: #{siglip_vision_embeddings.1} parent=5 // pred_check
        %p155 = pneg %p154
      $region22: #{siglip_vision_embeddings.1} parent=5 // pred_check_branch
        %157 = sbr.rel (%p155) target = $region24
      $region23: #{siglip_vision_embeddings.1} parent=5 // pred_region
        // Predicated region
        $region25: #{siglip_vision_embeddings.1} parent=23 // pred_check
          %p158 = pneg %p46
        $region26: #{siglip_vision_embeddings.1} parent=23 // pred_check_branch
          %160 = sbr.rel (%p158) target = $region28
        $region27: #{siglip_vision_embeddings.1} parent=23 // pred_region
          %s161 = smul.u32 2, %s19
          %p162 = scmp.lt.s32.totalorder %s20, 1
          %s163 = scalar_select %p162, %s20, 1
          %p164 = scmp.lt.s32.totalorder %s161, 1
          %s165 = scalar_select %p164, %s161, 1
          %s166 = smul.addr %s163, 2
          %s167 = sadd.s32 %s165, %s166
          %s168 = smul.addr %s167, 4
          %s169 = scalar_lea.vmem %s0, %s168
          %s170 = smul.u32 2, %s19
        $region28: #{siglip_vision_embeddings.1} parent=23 // pred_fallthru
          _
      $region24: #{siglip_vision_embeddings.1} parent=5 // pred_fallthru
        _
      %p171 = scmp.le.s32.totalorder 1, %s12
      %p172 = scmp.lt.s32.totalorder %s12, 3
      %p173 = pnand %p171, %p172
      %p174 = pneg %p173
      // Predicated region
      $region29: #{siglip_vision_embeddings.1} parent=5 // pred_check
        _
      $region30: #{siglip_vision_embeddings.1} parent=5 // pred_check_branch
        %176 = sbr.rel (%p173) target = $region32
      $region31: #{siglip_vision_embeddings.1} parent=5 // pred_region
        %s177 = ssub.s32 %s12, 1
        %s178 = smul.u32 2, %s21
        %p179 = scmp.lt.s32.totalorder %s22, 1
        %s180 = scalar_select %p179, %s22, 1
        %p181 = scmp.lt.s32.totalorder %s178, 1
        %s182 = scalar_select %p181, %s178, 1
        %s183 = smul.addr %s180, 2
        %s184 = sadd.s32 %s182, %s183
        %s185 = smul.addr %s184, 4
        %s186 = scalar_lea.vmem %s0, %s185
        %p187 = pneg %p52
        %p188 = pneg %p49
        %p189 = pneg %p73
        %p190 = pneg %p70
        %s191 = smul.u32 2, %s21
        %p192 = scmp.lt.s32.totalorder %s191, 1
        %s193 = scalar_select %p192, %s191, 1
        %s194 = smul.addr %s193, 4
        %s195 = scalar_lea.vmem %s2, %s194
        %p196 = pneg %p99
        %p197 = pneg %p96
        %p198 = pneg %p127
        %p199 = pneg %p124
        %s200 = sand.u32 %s114, 1
        %s201 = scalar_lea.sflag [#allocation3], %s200
        %s202 = sand.u32 %s114, 1
        %s203 = smul.addr %s202, 8
        %s204 = scalar_lea.vmem [#allocation2], %s203
        %s205 = smul.u32 2, %s21
        %p206 = scmp.lt.s32.totalorder %s22, 1
        %s207 = scalar_select %p206, %s22, 1
        %p208 = scmp.lt.s32.totalorder %s205, 1
        %s209 = scalar_select %p208, %s205, 1
        %s210 = smul.addr %s207, 2
        %s211 = sadd.s32 %s209, %s210
        %s212 = smul.addr %s211, 4
        %s213 = scalar_lea.vmem %s0, %s212
        %s214 = smul.u32 2, %s21
        %s215 = smul.u32 2, %s21
        %p216 = scmp.lt.s32.totalorder %s215, 1
        %s217 = scalar_select %p216, %s215, 1
        %s218 = smul.addr %s217, 4
        %s219 = scalar_lea.vmem %s2, %s218
        %s220 = smul.u32 2, %s21
        %s221 = smul.u32 2, %s21
        %v223 = vld [vmem:[%s213] sm:$0xf]
        %v224 = vld [vmem:[%s213 + $0x4] sm:$0xf]
        %v225 = vld [vmem:[%s1] sm:$0xf]
        %v226 = vld [vmem:[%s1 + $0x4] sm:$0xf]
        %v227 = vld [vmem:[%s1 + $0x8] sm:$0xf]
        %v228 = vld [vmem:[%s1 + $0xc] sm:$0xf]
        %v229 = vld [vmem:[%s1 + $0x10] sm:$0xf]
        %v230 = vld [vmem:[%s1 + $0x14] sm:$0xf]
        %v231 = vld [vmem:[%s1 + $0x18] sm:$0xf]
        %v232 = vld [vmem:[%s1 + $0x1c] sm:$0xf]
        %v233 = vld [vmem:[%s1 + $0x20] sm:$0xf]
        %v234 = vld [vmem:[%s1 + $0x24] sm:$0xf]
        %v235 = vld [vmem:[%s1 + $0x28] sm:$0xf]
        %v236 = vld [vmem:[%s1 + $0x2c] sm:$0xf]
        %v237 = vld [vmem:[%s1 + $0x30] sm:$0xf]
        %v238 = vld [vmem:[%s1 + $0x34] sm:$0xf]
        %v239 = vld [vmem:[%s1 + $0x38] sm:$0xf]
        %v240 = vld [vmem:[%s1 + $0x3c] sm:$0xf]
        %v241 = vld [vmem:[%s219] sm:$0xf]
        %v242 = vld [vmem:[%s219 + $0x4] sm:$0xf]
        %v243 = vunpack.c.l.bf16 %v241
        %v244 = vunpack.c.l.bf16 %v242
        %v247 = vunpack.c.l.b16 %v223
        %v248 = vunpack.c.l.b16 %v224
        %v249 = vpack.c.b16 %v248, %v247
        %v267 = vunpack.c.l.b16 %v225
        %v268 = vunpack.c.l.b16 %v226
        %v269 = vunpack.c.l.b16 %v227
        %v270 = vunpack.c.l.b16 %v228
        %v271 = vunpack.c.l.b16 %v229
        %v272 = vunpack.c.l.b16 %v230
        %v273 = vunpack.c.l.b16 %v231
        %v274 = vunpack.c.l.b16 %v232
        %v275 = vunpack.c.l.b16 %v233
        %v276 = vunpack.c.l.b16 %v234
        %v277 = vunpack.c.l.b16 %v235
        %v278 = vunpack.c.l.b16 %v236
        %v279 = vunpack.c.l.b16 %v237
        %v280 = vunpack.c.l.b16 %v238
        %v281 = vunpack.c.l.b16 %v239
        %v282 = vunpack.c.l.b16 %v240
        %v283 = vpack.c.b16 %v268, %v267
        %v284 = vpack.c.b16 %v270, %v269
        %v285 = vpack.c.b16 %v272, %v271
        %v286 = vpack.c.b16 %v274, %v273
        %v287 = vpack.c.b16 %v276, %v275
        %v288 = vpack.c.b16 %v278, %v277
        %v289 = vpack.c.b16 %v280, %v279
        %v290 = vpack.c.b16 %v282, %v281
        %299 = vmatprep.subr.bf16.mxu0 0
        %300 = vmatpush1.bf16.msra.mxu0 %v283
        %301 = vmatprep.subr.bf16.mxu0 0
        %302 = vmatpush1.bf16.msra.mxu0 %v284
        %303 = vmatprep.subr.bf16.mxu0 0
        %304 = vmatpush1.bf16.msra.mxu0 %v285
        %305 = vmatprep.subr.bf16.mxu0 0
        %306 = vmatpush1.bf16.msra.mxu0 %v286
        %307 = vmatprep.subr.bf16.mxu0 0
        %308 = vmatpush1.bf16.msra.mxu0 %v287
        %309 = vmatprep.subr.bf16.mxu0 0
        %310 = vmatpush1.bf16.msra.mxu0 %v288
        %311 = vmatprep.subr.bf16.mxu0 0
        %312 = vmatpush1.bf16.msra.mxu0 %v289
        %313 = vmatprep.subr.bf16.mxu0 0
        %314 = vmatpush1.bf16.msra.mxu0 %v290
        %315 = vmatprep.subr.bf16.mxu0 0
        %316 = vmatpush1.bf16.msra.mxu0 0
        %317 = vmatprep.subr.bf16.mxu0 0
        %318 = vmatpush1.bf16.msra.mxu0 0
        %319 = vmatprep.subr.bf16.mxu0 0
        %320 = vmatpush1.bf16.msra.mxu0 0
        %321 = vmatprep.subr.bf16.mxu0 0
        %322 = vmatpush1.bf16.msra.mxu0 0
        %323 = vmatprep.subr.bf16.mxu0 0
        %324 = vmatpush1.bf16.msra.mxu0 0
        %325 = vmatprep.subr.bf16.mxu0 0
        %326 = vmatpush1.bf16.msra.mxu0 0
        %327 = vmatprep.subr.bf16.mxu0 0
        %328 = vmatpush1.bf16.msra.mxu0 0
        %329 = vmatprep.subr.bf16.mxu0 0
        %330 = vmatpush1.bf16.msra.mxu0 0
        %331 = vmatprep.mubr.bf16.mxu0 0
        %332 = vmatmul.mubr.bf16.gmra.mrb[0].mxu0 %v249
        %v333 = vpop.f32.mrb[0].mxu0
        %v334 = vadd.f32 %v243, %v333
        %v335 = vpop.f32.mrb[0].mxu0
        %v336 = vpop.f32.mrb[0].mxu0
        %v337 = vadd.f32 %v244, %v336
        %v338 = vpop.f32.mrb[0].mxu0
        %339 = vdwg.mxu0
        %v340 = vpack.c.bf16 %v337, %v334
        %v342 = vunpack.c.l.b16 %v340
        %v343 = vunpack.c.h.b16 %v340
        %v344 = vpack.c.b16 %v342, %v342
        %v345 = vpack.c.b16 %v343, %v343
        %vm348 = vcmask 257024
        %349 = vst.msk [vmem:[%s204] sm:$0xf] %vm348, %v344
        %350 = vst.msk [vmem:[%s204 + $0x4] sm:$0xf] %vm348, %v345
        %s351 = sand.u32 %s114, 1
        %s352 = scalar_lea.sflag [#allocation3], %s351
        %s353 = sand.u32 %s114, 1
        %s354 = smul.addr %s353, 8
        %s355 = scalar_lea.vmem [#allocation2], %s354
        // Predicated region
        $region33: #{siglip_vision_embeddings.1} parent=31 // pred_check
          %p356 = pneg %p124
        $region34: #{siglip_vision_embeddings.1} parent=31 // pred_check_branch
          %358 = sbr.rel (%p356) target = $region36
        $region35: #{siglip_vision_embeddings.1} parent=31 // pred_region
          %s359 = smul.u32 2, %s21
          %s361 = ssub.s32 128, 128
          %362 = vsyncadd %s352, %s361
          %s363 = smul.addr %s22, 2
          %s364 = sadd.s32 %s359, %s363
          %s365 = smul.addr %s364, 64
          %s366 = scalar_lea.hbm %s3, %s365
          %s367 = sshll.u32 %s355, 4
          %s368 = int_to_ptr.vmem [resolvable:$true] %s367
          %373 = dma.vmem_to_hbm [thread:$0]  %s368, 128, %s366, %s352, 64, 64, 4
        $region36: #{siglip_vision_embeddings.1} parent=31 // pred_fallthru
          _
      $region32: #{siglip_vision_embeddings.1} parent=5 // pred_fallthru
        _
      %p374 = scmp.le.s32.totalorder 2, %s12
      // Predicated region
      $region37: #{siglip_vision_embeddings.1} parent=5 // pred_check
        %p375 = pneg %p374
      $region38: #{siglip_vision_embeddings.1} parent=5 // pred_check_branch
        %377 = sbr.rel (%p375) target = $region40
      $region39: #{siglip_vision_embeddings.1} parent=5 // pred_region
        %s378 = ssub.s32 %s12, 2
        // Predicated region
        $region41: #{siglip_vision_embeddings.1} parent=39 // pred_check
          %p379 = pneg %p130
        $region42: #{siglip_vision_embeddings.1} parent=39 // pred_check_branch
          %381 = sbr.rel (%p379) target = $region44
        $region43: #{siglip_vision_embeddings.1} parent=39 // pred_region
          %s382 = sand.u32 %s115, 1
          %s383 = scalar_lea.sflag [#allocation3], %s382
          %s384 = sand.u32 %s115, 1
          %s385 = smul.addr %s384, 8
          %s386 = scalar_lea.vmem [#allocation2], %s385
          %387 = dma.done %s383, 128
        $region44: #{siglip_vision_embeddings.1} parent=39 // pred_fallthru
          _
      $region40: #{siglip_vision_embeddings.1} parent=5 // pred_fallthru
        _
    $region6: #{siglip_vision_embeddings.1} parent=1 // loop_footer
      %s16 = sadd.s32 1, %s12
    $region7: #{siglip_vision_embeddings.1} parent=1 // loop_footer_branch
      %11 = sbr.rel target = $region3
    $region8: #{siglip_vision_embeddings.1} parent=1 // loop_exit
      _
    %388 = vsyncpa [#allocation3], 1
    %s389 = scalar_lea.sflag [#allocation3], 1
    %390 = vsyncpa %s389, 1

</llo_original>
